<compile_context>
chip_gen: v5e
topology: v5e:2x2
jax: 0.10.0
libtpu: 0.0.40
codegen_flags: <defaults>
</compile_context>

<pallas_src>
import functools

import jax
import jax.numpy as jnp
import numpy as np
from jax.experimental import pallas as pl
from jax.experimental.pallas import tpu as pltpu

_MARGIN = 0.2
_ROW_ALIGN = 32  # block row alignment (covers f32 / bf16 / int8 sublane packing)


def _round_up(x, m):
    return ((x + m - 1) // m) * m


def _round_down(x, m):
    return (x // m) * m


def _tpu_config():
    """Per-generation defaults: (#TensorCores, target block bytes, vmem limit)."""
    try:
        kind = jax.devices()[0].device_kind.lower()
    except Exception:
        kind = ""
    if "v7" in kind:
        # 2 TensorCores / chip, 64 MiB VMEM per TC.
        return 2, 8 * 1024 * 1024, 48 * 1024 * 1024
    if "v5 lite" in kind or "v5e" in kind:
        # 1 TC; scoped VMEM default is 16 MiB -> raise it explicitly.
        return 1, 4 * 1024 * 1024, 40 * 1024 * 1024
    if "v6" in kind or "trillium" in kind:
        # 1 TC, 128 MiB physical VMEM.
        return 1, 8 * 1024 * 1024, 64 * 1024 * 1024
    # Unknown / other: conservative.
    return 1, 4 * 1024 * 1024, 40 * 1024 * 1024


def _pick_fold(n, d):
    """Largest row-fold g such that the (n//g, g*d) view is lane-dense.

    The fold is a free, contiguous metadata reshape of the row-major (n, d)
    array.  It makes the DMA'd block fully lane-dense and lets one small
    indicator matmul put the per-row sums with the row index on lanes.
    Capped at 16 to bound wasted MACs in the block-diagonal weight."""
    for g in (16, 8, 4, 2):
        if n % g == 0 and (g * d) % 128 == 0:
            return g
    return 1


def _maxloss_kernel(y_ref, tgt_ref, eye_ref, bg_ref, out_ref, acc_ref, *,
                    d, g, m_total, block_m, n_blocks, blocks_per_shard,
                    full_cover):
    p = pl.program_id(0)  # TensorCore shard ("parallel")
    t = pl.program_id(1)  # streaming reduction step within shard ("arbitrary")

    # Zero the shard accumulator at the start of its sweep.
    @pl.when(t == 0)
    def _():
        acc_ref[...] = jnp.zeros_like(acc_ref)

    eye = eye_ref[0]
    bg = bg_ref[0]
    d_f = jnp.float32(d)

    yf = y_ref[...].astype(jnp.float32)  # (block_m, g*d), lane-dense for g > 1

    # Per-row s1 = sum(y), s2 = sum(y*y).  For g > 1 the folded block packs g
    # original rows per matrix-row, and a constant 0/1 block-indicator matmul
    # on the idle MXU produces (block_m, g) sums — no cross-lane XLU reduce.
    if g > 1:
        j = jax.lax.broadcasted_iota(jnp.int32, (g * d, g), 0)
        c = jax.lax.broadcasted_iota(jnp.int32, (g * d, g), 1)
        w = jnp.logical_and(j >= c * d, j < (c + 1) * d).astype(jnp.float32)
        s1 = jnp.dot(yf, w, preferred_element_type=jnp.float32)        # (block_m, g)
        s2 = jnp.dot(yf * yf, w, preferred_element_type=jnp.float32)   # (block_m, g)
    else:
        # Fallback (N or D not fold-friendly): plain lane reduction.
        s1 = jnp.sum(yf, axis=1, keepdims=True)                        # (block_m, 1)
        s2 = jnp.sum(yf * yf, axis=1, keepdims=True)

    # ||y - line||^2 = s2 - 2*line*s1 + D*line^2 ; clamp at 0 before sqrt.
    de2 = s2 - (2.0 * eye) * s1 + d_f * eye * eye
    db2 = s2 - (2.0 * bg) * s1 + d_f * bg * bg
    de = jnp.sqrt(jnp.maximum(de2, 0.0))
    db = jnp.sqrt(jnp.maximum(db2, 0.0))

    diff = de - db
    pos = jnp.maximum(diff + _MARGIN, 0.0)
    neg = jnp.maximum(_MARGIN - diff, 0.0)
    tgt = tgt_ref[...].astype(jnp.float32)  # (block_m, g)
    # t*pos + (1-t)*neg == neg + t*(pos - neg)   (one multiply fewer)
    per_row = neg + tgt * (pos - neg)

    if not full_cover:
        # Mask padded tail rows / duplicated clamped blocks of an
        # over-provisioned shard.  Must stay a select applied AFTER the
        # NaN-capable arithmetic (NaN * 0 == NaN).
        blk = p * blocks_per_shard + t
        row_base = jnp.minimum(blk, n_blocks - 1) * block_m
        rows = jax.lax.broadcasted_iota(jnp.int32, per_row.shape, 0)
        valid = jnp.logical_and(blk < n_blocks, (row_base + rows) < m_total)
        per_row = jnp.where(valid, per_row, jnp.float32(0.0))

    # Accumulate in scratch; write the output block only once, at the end of
    # this shard's sweep.
    acc_ref[...] += jnp.sum(per_row)

    @pl.when(t == pl.num_programs(1) - 1)
    def _():
        out_ref[...] = acc_ref[...]


def max_loss(y_pred, target, eye_line, bg_line, *, block_m=None, num_partials=None):
    """y_pred: (N, D) f32/bf16, target: (N, 1), eye/bg_line: (1,) f32 -> (1, 1) f32."""
    assert y_pred.ndim == 2
    n, d = y_pred.shape
    assert target.shape == (n, 1)

    num_tc, block_bytes, vmem_limit = _tpu_config()

    # Free lane-dense fold: (N, D) -> (N/g, g*D); target (N, 1) -> (N/g, g).
    g = _pick_fold(n, d)
    m_total = n // g
    feat = g * d
    y_f = y_pred.reshape(m_total, feat)
    t_f = target.reshape(m_total, g)

    in_itemsize = jnp.dtype(y_pred.dtype).itemsize
    auto_block = block_m is None
    if auto_block:
        block_m = max(_ROW_ALIGN,
                      _round_down(block_bytes // (feat * in_itemsize), _ROW_ALIGN))
    if block_m >= m_total:
        block_m = m_total            # single full-extent block (any size OK)
    elif block_m % _ROW_ALIGN:
        block_m = min(_round_up(block_m, _ROW_ALIGN), m_total)

    n_blocks = pl.cdiv(m_total, block_m)

    # "parallel" shard axis: 2 on 2-TC chips (v7x), 1 elsewhere.
    if num_partials is None:
        num_partials = num_tc
    num_partials = max(1, min(num_partials, n_blocks))

    # Prefer an even block split across TensorCores so both shards sweep the
    # same number of blocks and the mask path can compile out.
    if auto_block and num_partials > 1 and n_blocks % num_partials and block_m < m_total:
        tgt_blocks = _round_up(n_blocks, num_partials)
        bm2 = _round_up(pl.cdiv(m_total, tgt_blocks), _ROW_ALIGN)
        if 0 < bm2 < m_total and pl.cdiv(m_total, bm2) % num_partials == 0:
            block_m = bm2
            n_blocks = pl.cdiv(m_total, block_m)

    blocks_per_shard = pl.cdiv(n_blocks, num_partials)
    full_cover = (num_partials * blocks_per_shard == n_blocks
                  and n_blocks * block_m == m_total)

    kernel = functools.partial(
        _maxloss_kernel,
        d=d, g=g, m_total=m_total, block_m=block_m, n_blocks=n_blocks,
        blocks_per_shard=blocks_per_shard, full_cover=full_cover)

    def row_map(p, t):
        # Clamp so an over-provisioned shard never indexes past the last
        # block; the kernel masks the duplicate contribution to zero.
        return (jnp.minimum(p * blocks_per_shard + t, n_blocks - 1), 0)

    partials = pl.pallas_call(
        kernel,
        out_shape=jax.ShapeDtypeStruct((num_partials, 1, 1), jnp.float32),
        grid=(num_partials, blocks_per_shard),
        in_specs=[
            pl.BlockSpec((block_m, feat), row_map),
            pl.BlockSpec((block_m, g), row_map),
            pl.BlockSpec(memory_space=pltpu.SMEM),
            pl.BlockSpec(memory_space=pltpu.SMEM),
        ],
        out_specs=pl.BlockSpec((1, 1, 1), lambda p, t: (p, 0, 0)),
        scratch_shapes=[pltpu.VMEM((1, 1, 1), jnp.float32)],
        compiler_params=pltpu.CompilerParams(
            dimension_semantics=("parallel", "arbitrary"),
            vmem_limit_bytes=vmem_limit),
        cost_estimate=pl.CostEstimate(
            flops=int(2 * n * d * (2 * g + 3) + 16 * n),
            transcendentals=int(2 * n),
            bytes_accessed=int(n * d * in_itemsize
                               + n * jnp.dtype(target.dtype).itemsize
                               + 8 + 4 * num_partials),
        ),
    )(y_f, t_f, eye_line.astype(jnp.float32), bg_line.astype(jnp.float32))

    # Tiny epilogue: combine per-shard partial sums and normalize by N.
    return (jnp.sum(partials) / jnp.float32(n)).reshape(1, 1)


def max_loss_ref(y_pred, target, eye_line, bg_line):
    margin = 0.2
    yp = y_pred.astype(jnp.float32)
    d_eye = jnp.linalg.norm(yp - eye_line[0], axis=1, keepdims=True)
    d_bg = jnp.linalg.norm(yp - bg_line[0], axis=1, keepdims=True)
    pos = jax.nn.relu(d_eye - d_bg + margin)
    neg = jax.nn.relu(d_bg - d_eye + margin)
    tgt = target.astype(jnp.float32)
    # Elementwise reduction (exact f32) instead of an XLA matmul so the
    # reference is at least as precise as the kernel.
    loss = jnp.sum(tgt * pos + (1.0 - tgt) * neg)
    return (loss / target.shape[0]).reshape(1, 1)


if __name__ == "__main__":
    # Deterministic parameter init mirroring the module's __init__:
    #   eye_line = Parameter([1.0]), bg_line = Parameter([0.0])
    eye_line = jnp.array([1.0], dtype=jnp.float32)
    bg_line = jnp.array([0.0], dtype=jnp.float32)

    key = jax.random.PRNGKey(0)
    k1, k2, k3, k4, k5, k6 = jax.random.split(key, 6)

    # Tolerance leaves headroom for the MXU's pass decomposition of the f32
    # dot; a real indexing/semantics bug would be O(1) off.
    RTOL, ATOL = 1e-3, 1e-6

    # --- Case 1: small shapes consistent with the module (single block). ---
    N, D = 8, 32
    y_pred = jax.random.normal(k1, (N, D), dtype=jnp.float32)
    target = (jax.random.uniform(k2, (N, 1)) > 0.5).astype(jnp.float32)

    out = jax.block_until_ready(max_loss(y_pred, target, eye_line, bg_line))
    ref = max_loss_ref(y_pred, target, eye_line, bg_line)
    assert out.shape == (1, 1)
    np.testing.assert_allclose(np.asarray(out), np.asarray(ref), rtol=RTOL, atol=ATOL)

    # --- Case 2: multi-block grid, 2-shard split, partial tail (mask path). ---
    N2, D2 = 1000, 32
    y_pred2 = jax.random.normal(k3, (N2, D2), dtype=jnp.float32)
    target2 = (jax.random.uniform(k4, (N2, 1)) > 0.5).astype(jnp.float32)

    out2 = jax.block_until_ready(
        max_loss(y_pred2, target2, eye_line, bg_line, block_m=32, num_partials=2))
    ref2 = max_loss_ref(y_pred2, target2, eye_line, bg_line)
    assert out2.shape == (1, 1)
    np.testing.assert_allclose(np.asarray(out2), np.asarray(ref2), rtol=RTOL, atol=ATOL)

    # --- Case 3: fold-unfriendly shapes (g == 1 fallback path). ---
    N3, D3 = 50, 33
    y_pred3 = jax.random.normal(k5, (N3, D3), dtype=jnp.float32)
    target3 = (jax.random.uniform(k6, (N3, 1)) > 0.5).astype(jnp.float32)

    out3 = jax.block_until_ready(max_loss(y_pred3, target3, eye_line, bg_line))
    ref3 = max_loss_ref(y_pred3, target3, eye_line, bg_line)
    assert out3.shape == (1, 1)
    np.testing.assert_allclose(np.asarray(out3), np.asarray(ref3), rtol=RTOL, atol=ATOL)

    print("KERNEL_OK")
</pallas_src>

<mosaic_0001>
module attributes {stable_mosaic.version = 11 : i64} {
  func.func @_maxloss_kernel(%arg0: i32, %arg1: i32, %arg2: memref<1x256xf32, #tpu.memory_space<vmem>>, %arg3: memref<1x8xf32, #tpu.memory_space<vmem>>, %arg4: memref<1xf32, #tpu.memory_space<smem>>, %arg5: memref<1xf32, #tpu.memory_space<smem>>, %arg6: memref<1x1x1xf32, #tpu.memory_space<vmem>>, %arg7: memref<1x1x1xf32, #tpu.memory_space<vmem>>) attributes {dimension_semantics = [#tpu.dimension_semantics<parallel>, #tpu.dimension_semantics<arbitrary>], iteration_bounds = array<i64: 1, 1>, scalar_prefetch = 0 : i64, scratch_operands = 1 : i64, tpu.core_type = #tpu.core_type<tc>, window_params = [{transform_indices = @transform_0, window_bounds = array<i64: 1, 256>}, {transform_indices = @transform_1, window_bounds = array<i64: 1, 8>}, {transform_indices = @transform_2, window_bounds = array<i64: 1>}, {transform_indices = @transform_3, window_bounds = array<i64: 1>}, {transform_indices = @transform_4, window_bounds = array<i64: 1, 1, 1>}]} {
    %c0_i32 = arith.constant 0 : i32
    %0 = arith.cmpi eq, %arg1, %c0_i32 : i32
    %1 = arith.extui %0 : i1 to i32
    %c0_i32_0 = arith.constant 0 : i32
    %2 = arith.cmpi ne, %1, %c0_i32_0 : i32
    scf.if %2 {
      %cst_27 = arith.constant 0.000000e+00 : f32
      %68 = vector.broadcast %cst_27 : f32 to vector<1x1x1xf32>
      %c0_28 = arith.constant 0 : index
      %c0_29 = arith.constant 0 : index
      %c0_30 = arith.constant 0 : index
      %69 = vector.load %arg7[%c0_28, %c0_29, %c0_30] : memref<1x1x1xf32, #tpu.memory_space<vmem>>, vector<1x1x1xf32>
      tpu.vector_store %arg7[%c0_28, %c0_29, %c0_30], %68 {strides = array<i32>} : memref<1x1x1xf32, #tpu.memory_space<vmem>>, vector<1x1x1xf32>,
    } else {
    }
    %c0 = arith.constant 0 : index
    %3 = memref.load %arg4[%c0] : memref<1xf32, #tpu.memory_space<smem>>
    %c0_1 = arith.constant 0 : index
    %4 = memref.load %arg5[%c0_1] : memref<1xf32, #tpu.memory_space<smem>>
    %c0_2 = arith.constant 0 : index
    %c0_3 = arith.constant 0 : index
    %5 = vector.load %arg2[%c0_2, %c0_3] : memref<1x256xf32, #tpu.memory_space<vmem>>, vector<1x256xf32>
    %6 = tpu.iota {dimensions = array<i32: 0>} : vector<256x8xi32>
    %7 = tpu.iota {dimensions = array<i32: 1>} : vector<256x8xi32>
    %c32_i32 = arith.constant 32 : i32
    %8 = vector.broadcast %c32_i32 : i32 to vector<256x8xi32>
    %9 = arith.muli %7, %8 : vector<256x8xi32>
    %10 = arith.cmpi sge, %6, %9 : vector<256x8xi32>
    %c1_i32 = arith.constant 1 : i32
    %11 = vector.broadcast %c1_i32 : i32 to vector<256x8xi32>
    %12 = arith.addi %7, %11 : vector<256x8xi32>
    %c32_i32_4 = arith.constant 32 : i32
    %13 = vector.broadcast %c32_i32_4 : i32 to vector<256x8xi32>
    %14 = arith.muli %12, %13 : vector<256x8xi32>
    %15 = arith.cmpi slt, %6, %14 : vector<256x8xi32>
    %16 = arith.andi %10, %15 : vector<256x8xi1>
    %17 = arith.extui %16 : vector<256x8xi1> to vector<256x8xi32>
    %18 = arith.sitofp %17 : vector<256x8xi32> to vector<256x8xf32>
    %cst = arith.constant dense<0.000000e+00> : vector<1x8xf32>
    %19 = tpu.matmul %5, %18, %cst {dimension_numbers = #tpu.dot_dimension_numbers<[1], [0], [0], [1], [0, 0, 1, 1], [], []>} : vector<1x256xf32>, vector<256x8xf32>, vector<1x8xf32> -> vector<1x8xf32>
    %20 = arith.mulf %5, %5 : vector<1x256xf32>
    %cst_5 = arith.constant dense<0.000000e+00> : vector<1x8xf32>
    %21 = tpu.matmul %20, %18, %cst_5 {dimension_numbers = #tpu.dot_dimension_numbers<[1], [0], [0], [1], [0, 0, 1, 1], [], []>} : vector<1x256xf32>, vector<256x8xf32>, vector<1x8xf32> -> vector<1x8xf32>
    %cst_6 = arith.constant 2.000000e+00 : f32
    %22 = arith.mulf %cst_6, %3 : f32
    %23 = vector.broadcast %22 : f32 to vector<1x8xf32>
    %24 = arith.mulf %23, %19 : vector<1x8xf32>
    %25 = arith.subf %21, %24 : vector<1x8xf32>
    %cst_7 = arith.constant 3.200000e+01 : f32
    %26 = arith.mulf %cst_7, %3 : f32
    %27 = arith.mulf %26, %3 : f32
    %28 = vector.broadcast %27 : f32 to vector<1x8xf32>
    %29 = arith.addf %25, %28 : vector<1x8xf32>
    %cst_8 = arith.constant 2.000000e+00 : f32
    %30 = arith.mulf %cst_8, %4 : f32
    %31 = vector.broadcast %30 : f32 to vector<1x8xf32>
    %32 = arith.mulf %31, %19 : vector<1x8xf32>
    %33 = arith.subf %21, %32 : vector<1x8xf32>
    %cst_9 = arith.constant 3.200000e+01 : f32
    %34 = arith.mulf %cst_9, %4 : f32
    %35 = arith.mulf %34, %4 : f32
    %36 = vector.broadcast %35 : f32 to vector<1x8xf32>
    %37 = arith.addf %33, %36 : vector<1x8xf32>
    %cst_10 = arith.constant 0.000000e+00 : f32
    %38 = vector.broadcast %cst_10 : f32 to vector<1x8xf32>
    %39 = arith.maximumf %29, %38 : vector<1x8xf32>
    %40 = math.sqrt %39 : vector<1x8xf32>
    %cst_11 = arith.constant 0.000000e+00 : f32
    %41 = vector.broadcast %cst_11 : f32 to vector<1x8xf32>
    %42 = arith.maximumf %37, %41 : vector<1x8xf32>
    %43 = math.sqrt %42 : vector<1x8xf32>
    %44 = arith.subf %40, %43 : vector<1x8xf32>
    %cst_12 = arith.constant 2.000000e-01 : f32
    %45 = vector.broadcast %cst_12 : f32 to vector<1x8xf32>
    %46 = arith.addf %44, %45 : vector<1x8xf32>
    %cst_13 = arith.constant 0.000000e+00 : f32
    %47 = vector.broadcast %cst_13 : f32 to vector<1x8xf32>
    %48 = arith.maximumf %46, %47 : vector<1x8xf32>
    %cst_14 = arith.constant 2.000000e-01 : f32
    %49 = vector.broadcast %cst_14 : f32 to vector<1x8xf32>
    %50 = arith.subf %49, %44 : vector<1x8xf32>
    %cst_15 = arith.constant 0.000000e+00 : f32
    %51 = vector.broadcast %cst_15 : f32 to vector<1x8xf32>
    %52 = arith.maximumf %50, %51 : vector<1x8xf32>
    %c0_16 = arith.constant 0 : index
    %c0_17 = arith.constant 0 : index
    %53 = vector.load %arg3[%c0_16, %c0_17] : memref<1x8xf32, #tpu.memory_space<vmem>>, vector<1x8xf32>
    %54 = arith.subf %48, %52 : vector<1x8xf32>
    %55 = arith.mulf %53, %54 : vector<1x8xf32>
    %56 = arith.addf %52, %55 : vector<1x8xf32>
    %c0_18 = arith.constant 0 : index
    %c0_19 = arith.constant 0 : index
    %c0_20 = arith.constant 0 : index
    %57 = vector.load %arg7[%c0_18, %c0_19, %c0_20] : memref<1x1x1xf32, #tpu.memory_space<vmem>>, vector<1x1x1xf32>
    %58 = vector.shape_cast %56 : vector<1x8xf32> to vector<1x1x8xf32>
    %cst_21 = arith.constant dense<0.000000e+00> : vector<1xf32>
    %59 = vector.multi_reduction <add>, %58, %cst_21 [1, 2] : vector<1x1x8xf32> to vector<1xf32>
    %60 = vector.shape_cast %59 : vector<1xf32> to vector<1x1x1xf32>
    %61 = vector.extract %60[0, 0, 0] : f32 from vector<1x1x1xf32>
    %62 = vector.broadcast %61 : f32 to vector<1x1x1xf32>
    %63 = arith.addf %57, %62 : vector<1x1x1xf32>
    %c0_22 = arith.constant 0 : index
    %c0_23 = arith.constant 0 : index
    %c0_24 = arith.constant 0 : index
    %64 = vector.load %arg7[%c0_22, %c0_23, %c0_24] : memref<1x1x1xf32, #tpu.memory_space<vmem>>, vector<1x1x1xf32>
    tpu.vector_store %arg7[%c0_22, %c0_23, %c0_24], %63 {strides = array<i32>} : memref<1x1x1xf32, #tpu.memory_space<vmem>>, vector<1x1x1xf32>,
    %c0_i32_25 = arith.constant 0 : i32
    %65 = arith.cmpi eq, %arg1, %c0_i32_25 : i32
    %66 = arith.extui %65 : i1 to i32
    %c0_i32_26 = arith.constant 0 : i32
    %67 = arith.cmpi ne, %66, %c0_i32_26 : i32
    scf.if %67 {
      %c0_27 = arith.constant 0 : index
      %c0_28 = arith.constant 0 : index
      %c0_29 = arith.constant 0 : index
      %68 = vector.load %arg7[%c0_27, %c0_28, %c0_29] : memref<1x1x1xf32, #tpu.memory_space<vmem>>, vector<1x1x1xf32>
      %c0_30 = arith.constant 0 : index
      %c0_31 = arith.constant 0 : index
      %c0_32 = arith.constant 0 : index
      %69 = vector.load %arg6[%c0_30, %c0_31, %c0_32] : memref<1x1x1xf32, #tpu.memory_space<vmem>>, vector<1x1x1xf32>
      tpu.vector_store %arg6[%c0_30, %c0_31, %c0_32], %68 {strides = array<i32>} : memref<1x1x1xf32, #tpu.memory_space<vmem>>, vector<1x1x1xf32>,
    } else {
    }
    return
  }
  func.func @transform_0(%arg0: i32, %arg1: i32) -> (i32, i32) {
    %c1_i32 = arith.constant 1 : i32
    %0 = arith.muli %arg0, %c1_i32 : i32
    %1 = arith.addi %0, %arg1 : i32
    %c0_i32 = arith.constant 0 : i32
    %2 = arith.minsi %1, %c0_i32 : i32
    %c0_i32_0 = arith.constant 0 : i32
    %c0_i32_1 = arith.constant 0 : i32
    return %2, %c0_i32_0 : i32, i32
  }
  func.func @transform_1(%arg0: i32, %arg1: i32) -> (i32, i32) {
    %c1_i32 = arith.constant 1 : i32
    %0 = arith.muli %arg0, %c1_i32 : i32
    %1 = arith.addi %0, %arg1 : i32
    %c0_i32 = arith.constant 0 : i32
    %2 = arith.minsi %1, %c0_i32 : i32
    %c0_i32_0 = arith.constant 0 : i32
    %c0_i32_1 = arith.constant 0 : i32
    return %2, %c0_i32_0 : i32, i32
  }
  func.func @transform_2(%arg0: i32, %arg1: i32) -> i32 {
    %c0_i32 = arith.constant 0 : i32
    %c0_i32_0 = arith.constant 0 : i32
    return %c0_i32 : i32
  }
  func.func @transform_3(%arg0: i32, %arg1: i32) -> i32 {
    %c0_i32 = arith.constant 0 : i32
    %c0_i32_0 = arith.constant 0 : i32
    return %c0_i32 : i32
  }
  func.func @transform_4(%arg0: i32, %arg1: i32) -> (i32, i32, i32) {
    %c0_i32 = arith.constant 0 : i32
    %c0_i32_0 = arith.constant 0 : i32
    %c0_i32_1 = arith.constant 0 : i32
    return %arg0, %c0_i32, %c0_i32_0 : i32, i32, i32
  }
}

</mosaic_0001>

<llo_original>
// kernel: tpu_custom_call.1
$region0: #{tpu_custom_call.1}
  #allocation0 [shape = 'u32[]', space=smem, size = 0x4, offset = 0x4, fixed_abs, tag = 'smem constant byte address 0x4 - core index']
  #allocation1 [shape = 'u32[72,128]{1,0:T(1,128)}', space=vmem, size = 0x9000, scoped, tag = 'internal scratch']
  #allocation2 [shape = 'f32[1,1,1]{2,1,0:T(1,128)}', space=vmem, size = 0x200, scoped, tag = 'scratch operand']
  #allocation3 [shape = 'f32[1]{0:T(128)S(6)}', space=smem, size = 0x200, scoped, tag = 'scoped memory for tpu_custom_call.1']
  #allocation4 [shape = 'f32[1]{0:T(128)S(6)}', space=smem, size = 0x200, scoped, tag = 'scoped memory for tpu_custom_call.1']
  %s0 = inlined_call_operand.vmem [shape: f32[1,256], index: 0, kind: input, shape index: {}]
  %s1 = inlined_call_operand.vmem [shape: f32[1,8], index: 1, kind: input, shape index: {}]
  %s2 = inlined_call_operand.<no memory space> [shape: f32[1], index: 2, kind: input, shape index: {}]
  %s3 = inlined_call_operand.<no memory space> [shape: f32[1], index: 3, kind: input, shape index: {}]
  %s4 = inlined_call_operand.hbm [shape: f32[1,1,1], index: 4, kind: output, shape index: {}]
  %s5 = sld [smem:[#allocation0]]
  $region34: #{tpu_custom_call.1} parent=0
    _
  %s7 = ssub.s32 1, %s5
  %s8 = scalar_select 0, %s7, %s5
  %9 = sst [smem:[#allocation3]] %s2
  %10 = sst [smem:[#allocation4]] %s3
  $region1: #{tpu_custom_call.1} parent=0
    #allocation5 [shape = 'u8[512]{0}', space=vmem, size = 0x400, scoped, tag = 'output window, operand 0, single buffered']
    #allocation6 [shape = 's32[1]{0}', space=sflag, size = 0x4, scoped, tag = 'scoped memory for tpu_custom_call.1']
    %11 = vsyncpa [#allocation6], 0
    // Predicated region
    $region2: #{tpu_custom_call.1} parent=1 // pred_check
      _
    $region3: #{tpu_custom_call.1} parent=1 // pred_check_branch
      %13 = sbr.rel (0) target = $region5
    $region4: #{tpu_custom_call.1} parent=1 // pred_region
      %s14 = sadd.s32 0, 0
      %p15 = scmp.lt.s32.totalorder %s14, 0
      %s16 = scalar_select %p15, %s14, 0
      %p17 = scmp.lt.s32.totalorder %s16, 0
      %s18 = scalar_select %p17, %s16, 0
      %s19 = smul.addr %s18, 2
      %s20 = scalar_lea.vmem %s0, %s19
      %s21 = sadd.s32 0, 0
      %p22 = scmp.lt.s32.totalorder %s21, 0
      %s23 = scalar_select %p22, %s21, 0
    $region5: #{tpu_custom_call.1} parent=1 // pred_fallthru
      _
    // Predicated region
    $region6: #{tpu_custom_call.1} parent=1 // pred_check
      _
    $region7: #{tpu_custom_call.1} parent=1 // pred_check_branch
      %25 = sbr.rel (0) target = $region9
    $region8: #{tpu_custom_call.1} parent=1 // pred_region
      %s26 = sadd.s32 0, 0
      %p27 = scmp.lt.s32.totalorder %s26, 0
      %s28 = scalar_select %p27, %s26, 0
      %p29 = scmp.lt.s32.totalorder %s28, 0
      %s30 = scalar_select %p29, %s28, 0
      %s31 = scalar_lea.vmem %s1, %s30
      %s32 = sadd.s32 0, 0
      %p33 = scmp.lt.s32.totalorder %s32, 0
      %s34 = scalar_select %p33, %s32, 0
    $region9: #{tpu_custom_call.1} parent=1 // pred_fallthru
      _
    // Predicated region
    $region10: #{tpu_custom_call.1} parent=1 // pred_check
      _
    $region11: #{tpu_custom_call.1} parent=1 // pred_check_branch
      %36 = sbr.rel (0) target = $region13
    $region12: #{tpu_custom_call.1} parent=1 // pred_region
      _
    $region13: #{tpu_custom_call.1} parent=1 // pred_fallthru
      _
    // Predicated region
    $region14: #{tpu_custom_call.1} parent=1 // pred_check
      _
    $region15: #{tpu_custom_call.1} parent=1 // pred_check_branch
      %38 = sbr.rel (0) target = $region17
    $region16: #{tpu_custom_call.1} parent=1 // pred_region
      _
    $region17: #{tpu_custom_call.1} parent=1 // pred_fallthru
      _
    %s39 = sadd.s32 0, 0
    %p40 = scmp.lt.s32.totalorder %s39, 0
    %s41 = scalar_select %p40, %s39, 0
    %p42 = scmp.lt.s32.totalorder %s41, 0
    %s43 = scalar_select %p42, %s41, 0
    %s44 = smul.addr %s43, 2
    %s45 = scalar_lea.vmem %s0, %s44
    %s46 = sadd.s32 0, 0
    %p47 = scmp.lt.s32.totalorder %s46, 0
    %s48 = scalar_select %p47, %s46, 0
    %p49 = scmp.lt.s32.totalorder %s48, 0
    %s50 = scalar_select %p49, %s48, 0
    %s51 = scalar_lea.vmem %s1, %s50
    %s52 = sadd.s32 0, 0
    %p53 = scmp.lt.s32.totalorder %s52, 0
    %s54 = scalar_select %p53, %s52, 0
    %p55 = scmp.lt.s32.totalorder %s54, 0
    %s56 = scalar_select %p55, %s54, 0
    %s57 = smul.addr %s56, 2
    %s58 = scalar_lea.vmem %s0, %s57
    %s59 = sadd.s32 0, 0
    %p60 = scmp.lt.s32.totalorder %s59, 0
    %s61 = scalar_select %p60, %s59, 0
    %s62 = sadd.s32 0, 0
    %p63 = scmp.lt.s32.totalorder %s62, 0
    %s64 = scalar_select %p63, %s62, 0
    %p65 = scmp.lt.s32.totalorder %s64, 0
    %s66 = scalar_select %p65, %s64, 0
    %s67 = scalar_lea.vmem %s1, %s66
    %s68 = sadd.s32 0, 0
    %p69 = scmp.lt.s32.totalorder %s68, 0
    %s70 = scalar_select %p69, %s68, 0
    %p71 = scmp.eq.s32.totalorder 0, 0
    // Predicated region
    $region18: #{tpu_custom_call.1} parent=1 // pred_check
      %p72 = pneg %p71
    $region19: #{tpu_custom_call.1} parent=1 // pred_check_branch
      %74 = sbr.rel (%p72) target = $region21
    $region20: #{tpu_custom_call.1} parent=1 // pred_region
      %vm75 = vcmask 0
      %76 = vst.msk [vmem:[#allocation2] sm:$0x1] %vm75, 0.0
    $region21: #{tpu_custom_call.1} parent=1 // pred_fallthru
      _
    %s77 = sld [smem:[#allocation3]]
    %s78 = sld [smem:[#allocation4]]
    %v79 = vld [vmem:[%s58] sm:$0x3]
    %v80 = vlaneseq
    %v81 = vshrl.u32 %v80, 7
    %v82 = vadd.s32 %v81, 8
    %v83 = vadd.s32 %v81, 16
    %v84 = vadd.s32 %v81, 24
    %v85 = vadd.s32 %v81, 32
    %v86 = vadd.s32 %v81, 40
    %v87 = vadd.s32 %v81, 48
    %v88 = vadd.s32 %v81, 56
    %v89 = vadd.s32 %v81, 64
    %v90 = vadd.s32 %v81, 72
    %v91 = vadd.s32 %v81, 80
    %v92 = vadd.s32 %v81, 88
    %v93 = vadd.s32 %v81, 96
    %v94 = vadd.s32 %v81, 104
    %v95 = vadd.s32 %v81, 112
    %v96 = vadd.s32 %v81, 120
    %v97 = vadd.s32 %v81, 128
    %v98 = vadd.s32 %v81, 136
    %v99 = vadd.s32 %v81, 144
    %v100 = vadd.s32 %v81, 152
    %v101 = vadd.s32 %v81, 160
    %v102 = vadd.s32 %v81, 168
    %v103 = vadd.s32 %v81, 176
    %v104 = vadd.s32 %v81, 184
    %v105 = vadd.s32 %v81, 192
    %v106 = vadd.s32 %v81, 200
    %v107 = vadd.s32 %v81, 208
    %v108 = vadd.s32 %v81, 216
    %v109 = vadd.s32 %v81, 224
    %v110 = vadd.s32 %v81, 232
    %v111 = vadd.s32 %v81, 240
    %v112 = vadd.s32 %v81, 248
    %v113 = vlaneseq
    %v114 = vand.u32 %v113, 127
    %v115 = vmul.u32 %v114, 32
    %vm116 = vcmp.ge.s32.totalorder %v81, %v115
    %vm117 = vcmp.ge.s32.totalorder %v82, %v115
    %vm118 = vcmp.ge.s32.totalorder %v83, %v115
    %vm119 = vcmp.ge.s32.totalorder %v84, %v115
    %vm120 = vcmp.ge.s32.totalorder %v85, %v115
    %vm121 = vcmp.ge.s32.totalorder %v86, %v115
    %vm122 = vcmp.ge.s32.totalorder %v87, %v115
    %vm123 = vcmp.ge.s32.totalorder %v88, %v115
    %vm124 = vcmp.ge.s32.totalorder %v89, %v115
    %vm125 = vcmp.ge.s32.totalorder %v90, %v115
    %vm126 = vcmp.ge.s32.totalorder %v91, %v115
    %vm127 = vcmp.ge.s32.totalorder %v92, %v115
    %vm128 = vcmp.ge.s32.totalorder %v93, %v115
    %vm129 = vcmp.ge.s32.totalorder %v94, %v115
    %vm130 = vcmp.ge.s32.totalorder %v95, %v115
    %vm131 = vcmp.ge.s32.totalorder %v96, %v115
    %vm132 = vcmp.ge.s32.totalorder %v97, %v115
    %vm133 = vcmp.ge.s32.totalorder %v98, %v115
    %vm134 = vcmp.ge.s32.totalorder %v99, %v115
    %vm135 = vcmp.ge.s32.totalorder %v100, %v115
    %vm136 = vcmp.ge.s32.totalorder %v101, %v115
    %vm137 = vcmp.ge.s32.totalorder %v102, %v115
    %vm138 = vcmp.ge.s32.totalorder %v103, %v115
    %vm139 = vcmp.ge.s32.totalorder %v104, %v115
    %vm140 = vcmp.ge.s32.totalorder %v105, %v115
    %vm141 = vcmp.ge.s32.totalorder %v106, %v115
    %vm142 = vcmp.ge.s32.totalorder %v107, %v115
    %vm143 = vcmp.ge.s32.totalorder %v108, %v115
    %vm144 = vcmp.ge.s32.totalorder %v109, %v115
    %vm145 = vcmp.ge.s32.totalorder %v110, %v115
    %vm146 = vcmp.ge.s32.totalorder %v111, %v115
    %vm147 = vcmp.ge.s32.totalorder %v112, %v115
    %v148 = vadd.s32 %v114, 1
    %v149 = vmul.u32 %v148, 32
    %vm150 = vcmp.lt.s32.totalorder %v81, %v149
    %vm151 = vcmp.lt.s32.totalorder %v82, %v149
    %vm152 = vcmp.lt.s32.totalorder %v83, %v149
    %vm153 = vcmp.lt.s32.totalorder %v84, %v149
    %vm154 = vcmp.lt.s32.totalorder %v85, %v149
    %vm155 = vcmp.lt.s32.totalorder %v86, %v149
    %vm156 = vcmp.lt.s32.totalorder %v87, %v149
    %vm157 = vcmp.lt.s32.totalorder %v88, %v149
    %vm158 = vcmp.lt.s32.totalorder %v89, %v149
    %vm159 = vcmp.lt.s32.totalorder %v90, %v149
    %vm160 = vcmp.lt.s32.totalorder %v91, %v149
    %vm161 = vcmp.lt.s32.totalorder %v92, %v149
    %vm162 = vcmp.lt.s32.totalorder %v93, %v149
    %vm163 = vcmp.lt.s32.totalorder %v94, %v149
    %vm164 = vcmp.lt.s32.totalorder %v95, %v149
    %vm165 = vcmp.lt.s32.totalorder %v96, %v149
    %vm166 = vcmp.lt.s32.totalorder %v97, %v149
    %vm167 = vcmp.lt.s32.totalorder %v98, %v149
    %vm168 = vcmp.lt.s32.totalorder %v99, %v149
    %vm169 = vcmp.lt.s32.totalorder %v100, %v149
    %vm170 = vcmp.lt.s32.totalorder %v101, %v149
    %vm171 = vcmp.lt.s32.totalorder %v102, %v149
    %vm172 = vcmp.lt.s32.totalorder %v103, %v149
    %vm173 = vcmp.lt.s32.totalorder %v104, %v149
    %vm174 = vcmp.lt.s32.totalorder %v105, %v149
    %vm175 = vcmp.lt.s32.totalorder %v106, %v149
    %vm176 = vcmp.lt.s32.totalorder %v107, %v149
    %vm177 = vcmp.lt.s32.totalorder %v108, %v149
    %vm178 = vcmp.lt.s32.totalorder %v109, %v149
    %vm179 = vcmp.lt.s32.totalorder %v110, %v149
    %vm180 = vcmp.lt.s32.totalorder %v111, %v149
    %vm181 = vcmp.lt.s32.totalorder %v112, %v149
    %vm182 = vmand %vm116, %vm150
    %vm183 = vmand %vm117, %vm151
    %vm184 = vmand %vm118, %vm152
    %vm185 = vmand %vm119, %vm153
    %vm186 = vmand %vm120, %vm154
    %vm187 = vmand %vm121, %vm155
    %vm188 = vmand %vm122, %vm156
    %vm189 = vmand %vm123, %vm157
    %vm190 = vmand %vm124, %vm158
    %vm191 = vmand %vm125, %vm159
    %vm192 = vmand %vm126, %vm160
    %vm193 = vmand %vm127, %vm161
    %vm194 = vmand %vm128, %vm162
    %vm195 = vmand %vm129, %vm163
    %vm196 = vmand %vm130, %vm164
    %vm197 = vmand %vm131, %vm165
    %vm198 = vmand %vm132, %vm166
    %vm199 = vmand %vm133, %vm167
    %vm200 = vmand %vm134, %vm168
    %vm201 = vmand %vm135, %vm169
    %vm202 = vmand %vm136, %vm170
    %vm203 = vmand %vm137, %vm171
    %vm204 = vmand %vm138, %vm172
    %vm205 = vmand %vm139, %vm173
    %vm206 = vmand %vm140, %vm174
    %vm207 = vmand %vm141, %vm175
    %vm208 = vmand %vm142, %vm176
    %vm209 = vmand %vm143, %vm177
    %vm210 = vmand %vm144, %vm178
    %vm211 = vmand %vm145, %vm179
    %vm212 = vmand %vm146, %vm180
    %vm213 = vmand %vm147, %vm181
    %v214 = vsel %vm182, 1, 0
    %v215 = vsel %vm183, 1, 0
    %v216 = vsel %vm184, 1, 0
    %v217 = vsel %vm185, 1, 0
    %v218 = vsel %vm186, 1, 0
    %v219 = vsel %vm187, 1, 0
    %v220 = vsel %vm188, 1, 0
    %v221 = vsel %vm189, 1, 0
    %v222 = vsel %vm190, 1, 0
    %v223 = vsel %vm191, 1, 0
    %v224 = vsel %vm192, 1, 0
    %v225 = vsel %vm193, 1, 0
    %v226 = vsel %vm194, 1, 0
    %v227 = vsel %vm195, 1, 0
    %v228 = vsel %vm196, 1, 0
    %v229 = vsel %vm197, 1, 0
    %v230 = vsel %vm198, 1, 0
    %v231 = vsel %vm199, 1, 0
    %v232 = vsel %vm200, 1, 0
    %v233 = vsel %vm201, 1, 0
    %v234 = vsel %vm202, 1, 0
    %v235 = vsel %vm203, 1, 0
    %v236 = vsel %vm204, 1, 0
    %v237 = vsel %vm205, 1, 0
    %v238 = vsel %vm206, 1, 0
    %v239 = vsel %vm207, 1, 0
    %v240 = vsel %vm208, 1, 0
    %v241 = vsel %vm209, 1, 0
    %v242 = vsel %vm210, 1, 0
    %v243 = vsel %vm211, 1, 0
    %v244 = vsel %vm212, 1, 0
    %v245 = vsel %vm213, 1, 0
    %v246 = vcvt.s32.f32 %v214
    %v247 = vcvt.s32.f32 %v215
    %v248 = vcvt.s32.f32 %v216
    %v249 = vcvt.s32.f32 %v217
    %v250 = vcvt.s32.f32 %v218
    %v251 = vcvt.s32.f32 %v219
    %v252 = vcvt.s32.f32 %v220
    %v253 = vcvt.s32.f32 %v221
    %v254 = vcvt.s32.f32 %v222
    %v255 = vcvt.s32.f32 %v223
    %v256 = vcvt.s32.f32 %v224
    %v257 = vcvt.s32.f32 %v225
    %v258 = vcvt.s32.f32 %v226
    %v259 = vcvt.s32.f32 %v227
    %v260 = vcvt.s32.f32 %v228
    %v261 = vcvt.s32.f32 %v229
    %v262 = vcvt.s32.f32 %v230
    %v263 = vcvt.s32.f32 %v231
    %v264 = vcvt.s32.f32 %v232
    %v265 = vcvt.s32.f32 %v233
    %v266 = vcvt.s32.f32 %v234
    %v267 = vcvt.s32.f32 %v235
    %v268 = vcvt.s32.f32 %v236
    %v269 = vcvt.s32.f32 %v237
    %v270 = vcvt.s32.f32 %v238
    %v271 = vcvt.s32.f32 %v239
    %v272 = vcvt.s32.f32 %v240
    %v273 = vcvt.s32.f32 %v241
    %v274 = vcvt.s32.f32 %v242
    %v275 = vcvt.s32.f32 %v243
    %v276 = vcvt.s32.f32 %v244
    %v277 = vcvt.s32.f32 %v245
    %v279 = vperm.slane %v79, 0
    %v280 = vperm.slane %v79, 1
    %283 = vmatpush.msra.mxu0 %v261
    %284 = vmatpush.msra.mxu0 %v260
    %285 = vmatpush.msra.mxu0 %v259
    %286 = vmatpush.msra.mxu0 %v258
    %287 = vmatpush.msra.mxu0 %v257
    %288 = vmatpush.msra.mxu0 %v256
    %289 = vmatpush.msra.mxu0 %v255
    %290 = vmatpush.msra.mxu0 %v254
    %291 = vmatpush.msra.mxu0 %v253
    %292 = vmatpush.msra.mxu0 %v252
    %293 = vmatpush.msra.mxu0 %v251
    %294 = vmatpush.msra.mxu0 %v250
    %295 = vmatpush.msra.mxu0 %v249
    %296 = vmatpush.msra.mxu0 %v248
    %297 = vmatpush.msra.mxu0 %v247
    %298 = vmatpush.msra.mxu0 %v246
    %299 = vmatmul.f32.gmra.mxu0 %v279
    %v300 = vpop.f32.mrf.mxu0
    %v301 = vadd.f32 0.0, %v300
    %302 = vdwg.mxu0
    %303 = vmatpush.msra.mxu0 %v277
    %304 = vmatpush.msra.mxu0 %v276
    %305 = vmatpush.msra.mxu0 %v275
    %306 = vmatpush.msra.mxu0 %v274
    %307 = vmatpush.msra.mxu0 %v273
    %308 = vmatpush.msra.mxu0 %v272
    %309 = vmatpush.msra.mxu0 %v271
    %310 = vmatpush.msra.mxu0 %v270
    %311 = vmatpush.msra.mxu0 %v269
    %312 = vmatpush.msra.mxu0 %v268
    %313 = vmatpush.msra.mxu0 %v267
    %314 = vmatpush.msra.mxu0 %v266
    %315 = vmatpush.msra.mxu0 %v265
    %316 = vmatpush.msra.mxu0 %v264
    %317 = vmatpush.msra.mxu0 %v263
    %318 = vmatpush.msra.mxu0 %v262
    %319 = vmatmul.f32.gmra.mxu0 %v280
    %v320 = vpop.f32.mrf.mxu0
    %v321 = vadd.f32 %v301, %v320
    %322 = vdwg.mxu0
    %v323 = vmul.f32 %v79, %v79
    %v325 = vperm.slane %v323, 0
    %v326 = vperm.slane %v323, 1
    %329 = vmatpush.msra.mxu0 %v261
    %330 = vmatpush.msra.mxu0 %v260
    %331 = vmatpush.msra.mxu0 %v259
    %332 = vmatpush.msra.mxu0 %v258
    %333 = vmatpush.msra.mxu0 %v257
    %334 = vmatpush.msra.mxu0 %v256
    %335 = vmatpush.msra.mxu0 %v255
    %336 = vmatpush.msra.mxu0 %v254
    %337 = vmatpush.msra.mxu0 %v253
    %338 = vmatpush.msra.mxu0 %v252
    %339 = vmatpush.msra.mxu0 %v251
    %340 = vmatpush.msra.mxu0 %v250
    %341 = vmatpush.msra.mxu0 %v249
    %342 = vmatpush.msra.mxu0 %v248
    %343 = vmatpush.msra.mxu0 %v247
    %344 = vmatpush.msra.mxu0 %v246
    %345 = vmatmul.f32.gmra.mxu0 %v325
    %v346 = vpop.f32.mrf.mxu0
    %v347 = vadd.f32 0.0, %v346
    %348 = vdwg.mxu0
    %349 = vmatpush.msra.mxu0 %v277
    %350 = vmatpush.msra.mxu0 %v276
    %351 = vmatpush.msra.mxu0 %v275
    %352 = vmatpush.msra.mxu0 %v274
    %353 = vmatpush.msra.mxu0 %v273
    %354 = vmatpush.msra.mxu0 %v272
    %355 = vmatpush.msra.mxu0 %v271
    %356 = vmatpush.msra.mxu0 %v270
    %357 = vmatpush.msra.mxu0 %v269
    %358 = vmatpush.msra.mxu0 %v268
    %359 = vmatpush.msra.mxu0 %v267
    %360 = vmatpush.msra.mxu0 %v266
    %361 = vmatpush.msra.mxu0 %v265
    %362 = vmatpush.msra.mxu0 %v264
    %363 = vmatpush.msra.mxu0 %v263
    %364 = vmatpush.msra.mxu0 %v262
    %365 = vmatmul.f32.gmra.mxu0 %v326
    %v366 = vpop.f32.mrf.mxu0
    %v367 = vadd.f32 %v347, %v366
    %368 = vdwg.mxu0
    %s369 = smul.f32 %s77, 2.0
    %v370 = vstv %s369
    %v371 = vmul.f32 %v370, %v321
    %v372 = vsub.f32 %v367, %v371
    %s373 = smul.f32 %s77, 32.0
    %s374 = smul.f32 %s373, %s77
    %v375 = vstv %s374
    %v376 = vadd.f32 %v372, %v375
    %s377 = smul.f32 %s78, 2.0
    %v378 = vstv %s377
    %v379 = vmul.f32 %v378, %v321
    %v380 = vsub.f32 %v367, %v379
    %s381 = smul.f32 %s78, 32.0
    %s382 = smul.f32 %s381, %s78
    %v383 = vstv %s382
    %v384 = vadd.f32 %v380, %v383
    %v385 = vmax.f32 %v376, 0.0
    %v386 = vrsqrt.pop %v385
    %v387 = vmul.f32 %v386, %v385
    %v388 = vmul.f32 %v387, %v386
    %v389 = vmul.f32 0.5, %v388
    %v390 = vsub.f32 1.5, %v389
    %v391 = vmul.f32 %v386, %v390
    %v392 = vmul.f32 %v385, %v391
    %vm393 = vcmp.eq.f32.partialorder %v385, inf
    %v394 = vsel %vm393, %v385, %v392
    %vm395 = vcmp.eq.f32.partialorder %v385, 0.0
    %v396 = vand.u32 %v385, 2147483648
    %v397 = vsel %vm395, %v396, %v394
    %v398 = vmax.f32 %v384, 0.0
    %v399 = vrsqrt.pop %v398
    %v400 = vmul.f32 %v399, %v398
    %v401 = vmul.f32 %v400, %v399
    %v402 = vmul.f32 0.5, %v401
    %v403 = vsub.f32 1.5, %v402
    %v404 = vmul.f32 %v399, %v403
    %v405 = vmul.f32 %v398, %v404
    %vm406 = vcmp.eq.f32.partialorder %v398, inf
    %v407 = vsel %vm406, %v398, %v405
    %vm408 = vcmp.eq.f32.partialorder %v398, 0.0
    %v409 = vand.u32 %v398, 2147483648
    %v410 = vsel %vm408, %v409, %v407
    %v411 = vsub.f32 %v397, %v410
    %v412 = vadd.f32 %v411, 0.2
    %v413 = vmax.f32 %v412, 0.0
    %v414 = vsub.f32 0.2, %v411
    %v415 = vmax.f32 %v414, 0.0
    %v416 = vld [vmem:[%s67] sm:$0x1]
    %v417 = vsub.f32 %v413, %v415
    %v418 = vmul.f32 %v416, %v417
    %v419 = vadd.f32 %v415, %v418
    %v420 = vld [vmem:[#allocation2] sm:$0x1]
    %vm421 = vcmask 57344
    %v422 = vsel %vm421, %v419, 0.0
    %423 = vadd.xlane.f32.xlu0 %v422
    %v424 = vpop.xlane.xlu0 %423
    %v425 = vrot.slane %v424, 4
    %v426 = vadd.f32 %v424, %v425
    %v427 = vrot.slane %v426, 2
    %v428 = vadd.f32 %v426, %v427
    %v429 = vrot.slane %v428, 1
    %v430 = vadd.f32 %v428, %v429
    %s431 = vtos %v430
    %v432 = vstv %s431
    %v433 = vadd.f32 %v420, %v432
    %vm434 = vcmask 0
    %435 = vst.msk [vmem:[#allocation2] sm:$0x1] %vm434, %v433
    // Predicated region
    $region22: #{tpu_custom_call.1} parent=1 // pred_check
      %p436 = pneg %p71
    $region23: #{tpu_custom_call.1} parent=1 // pred_check_branch
      %438 = sbr.rel (%p436) target = $region25
    $region24: #{tpu_custom_call.1} parent=1 // pred_region
      %v439 = vld [vmem:[#allocation2] sm:$0x1]
      %440 = vst.msk [vmem:[#allocation5] sm:$0x1] %vm434, %v439
    $region25: #{tpu_custom_call.1} parent=1 // pred_fallthru
      _
    // Predicated region
    $region26: #{tpu_custom_call.1} parent=1 // pred_check
      _
    $region27: #{tpu_custom_call.1} parent=1 // pred_check_branch
      %442 = sbr.rel (0) target = $region29
    $region28: #{tpu_custom_call.1} parent=1 // pred_region
      %444 = vsyncadd [#allocation6], 0
      %s446 = sshll.u32 [#allocation5], 4
      %s447 = int_to_ptr.vmem [resolvable:$true] %s446
      %s448 = sshll.u32 %s4, 4
      %s449 = int_to_ptr.hbm [resolvable:$true] %s448
      %451 = dma.vmem_to_hbm [thread:$0]  %s447, 16, %s449, [#allocation6]
    $region29: #{tpu_custom_call.1} parent=1 // pred_fallthru
      _
    // Predicated region
    $region30: #{tpu_custom_call.1} parent=1 // pred_check
      _
    $region31: #{tpu_custom_call.1} parent=1 // pred_check_branch
      %453 = sbr.rel (0) target = $region33
    $region32: #{tpu_custom_call.1} parent=1 // pred_region
      %455 = dma.done [#allocation6], 16
    $region33: #{tpu_custom_call.1} parent=1 // pred_fallthru
      _
    %456 = vsyncpa [#allocation6], 1

</llo_original>
